<compile_context>
chip_gen: v7x
topology: tpu7x:2x2x1
jax: 0.10.0
libtpu: 0.0.40
codegen_flags: <defaults>
</compile_context>

<pallas_src>
import functools

import jax
import jax.numpy as jnp
from jax.experimental import pallas as pl
from jax.experimental.pallas import tpu as pltpu


def _stcc_kernel(x_ref, xl_ref, w_ref, bc_ref, br_ref, o_ref, *, n, nl, bt):
    # x_ref : (C4, bt*N*L)  packed activations, lane axis = flattened [batch, n, t]
    # xl_ref: (bt*N, C4)    last-timestep activations, row = (batch, n)
    # w_ref : (C, C4)       1x1 conv weight
    # bc_ref: (C, 1)        conv bias, column layout (f32)
    # br_ref: (1, C)        conv bias, row layout (f32)
    # o_ref : (bt*N, N*L)   packed correlation output
    w = w_ref[...]
    c = w_ref.shape[0]

    # 1x1 conv == one lane-dense channel matmul over all packed batches (f32 accumulate).
    fc_all = (jnp.dot(w, x_ref[...], preferred_element_type=jnp.float32)
              + bc_ref[...])                                             # (C, bt*NL)

    # Fl for all packed batches in one matmul, produced directly in (bt*N, C) layout so
    # the correlation below is a plain A @ B (no per-batch XLU transpose on the way in).
    fl_t = (jax.lax.dot_general(xl_ref[...], w,
                                dimension_numbers=(((1,), (1,)), ((), ())),
                                preferred_element_type=jnp.float32)
            + br_ref[...])                                               # (bt*N, C)

    # One folded correlation matmul; the MXU is <5% utilised at K=C so the off-diagonal
    # batch blocks are free, and 2*bt tiny MXU push/pop pairs collapse to one.
    xy_all = jnp.dot(fl_t, fc_all, preferred_element_type=jnp.float32)  # (bt*N, bt*NL)

    # Diagonal mask so the per-channel xx*yy sum needs no sublane<->lane relayout.
    eye_c = (jax.lax.broadcasted_iota(jnp.int32, (c, c), 0)
             == jax.lax.broadcasted_iota(jnp.int32, (c, c), 1)).astype(jnp.float32)

    # Per-packed-batch normalisation.  bt is tiny & static -> unrolled at trace time;
    # every slice below is a contiguous sublane/lane-aligned chunk.
    for b in range(bt):
        fl_b = fl_t[b * n:(b + 1) * n, :]                                # (N, C)
        fc_b = fc_all[:, b * nl:(b + 1) * nl]                            # (C, NL)
        xx_sq = jnp.sum(fl_b * fl_b, axis=0, keepdims=True)              # (1, C)
        yy_sq = jnp.sum(fc_b * fc_b, axis=1, keepdims=True)              # (C, 1)
        # l2 = sum_c sqrt(xx_c)*sqrt(yy_c): read it off the diagonal of the broadcast
        # outer product (avoids a degenerate 1xC matmul or a tiny transpose).
        l2 = jnp.sum(jnp.sqrt(yy_sq * xx_sq) * eye_c)                    # scalar
        # Exact scalar reciprocal once, then one broadcast multiply.
        # NOTE: no epsilon guard — matches torch.div in the reference module.
        inv_l2 = 1.0 / l2
        xy_b = xy_all[b * n:(b + 1) * n, b * nl:(b + 1) * nl]            # (N, NL)
        o_ref[b * n:(b + 1) * n, :] = (xy_b * inv_l2).astype(o_ref.dtype)


def _dual_tensorcore():
    """Best-effort: does the local TPU expose 2 TensorCores per device (v7x / megacore)?"""
    try:
        d = jax.devices()[0]
        if d.platform != "tpu":
            return False
        kind = (getattr(d, "device_kind", "") or "").lower().replace(" ", "")
        return any(tag in kind for tag in ("v7", "7x", "v4", "v5p"))
    except Exception:
        return False


def _choose_batches_per_step(B, c, c4, n, nl, act_isz, out_isz, dual_tc,
                             vmem_budget=24 * 1024 * 1024):
    """Pack as many batches per grid step as comfortably fit the ~32 MiB scoped VMEM
    (grid collapses to one step on single-TC parts), but keep >=2 parallel steps on
    dual-TensorCore parts so both cores are fed."""

    def per_step_bytes(bt):
        x_blk = c4 * bt * nl * act_isz          # packed activations block
        xl_blk = bt * n * c4 * act_isz          # last-timestep block
        out_blk = bt * n * nl * out_isz         # output block
        fc_all = c * bt * nl * 4                # f32 conv result
        fl_t = bt * n * c * 4                   # f32 Fl
        xy_all = bt * n * bt * nl * 4           # folded f32 correlation intermediate
        # inputs/outputs are double-buffered by the Pallas pipeline
        return 2 * (x_blk + xl_blk + out_blk) + fc_all + fl_t + xy_all

    def tiling_ok(bt):
        if bt == B:                              # single step: blocks equal full dims
            return True
        # (8,128) rule for the packed blocks when the grid has more than one step.
        return (bt * nl) % 128 == 0 and (bt * n) % 8 == 0

    candidates = [bt for bt in range(1, B + 1) if B % bt == 0 and tiling_ok(bt)]
    in_budget = [bt for bt in candidates if per_step_bytes(bt) <= vmem_budget] or candidates
    if dual_tc and B >= 2:
        multi = [bt for bt in in_budget if B // bt >= 2]
        if multi:
            return max(multi)
    return max(in_budget)


def spatio_temporal_correlation(x, weight, bias, *, batches_per_step=None,
                                compute_dtype=jnp.bfloat16, out_dtype=jnp.float32):
    """x: (B, C4, N, L); weight: (C, C4); bias: (C,).  Returns (B, N, N, L) out_dtype."""
    B, c4, n, l4 = x.shape
    c = weight.shape[0]
    nl = n * l4

    act_isz = jnp.dtype(compute_dtype).itemsize
    out_isz = jnp.dtype(out_dtype).itemsize

    if batches_per_step is None:
        batches_per_step = _choose_batches_per_step(
            B, c, c4, n, nl, act_isz, out_isz, _dual_tensorcore())
    bt = batches_per_step
    assert B % bt == 0, (B, bt)
    steps = B // bt
    if steps > 1:
        assert (bt * nl) % 128 == 0 and (bt * n) % 8 == 0, (bt, n, nl)

    # Packed activation slab: lane axis = flattened (batch, n, t).  One fused
    # transpose+reshape+cast; if the producer can emit channel-major (C4, B, N, L)
    # directly, this relayout (the largest wrapper cost) disappears entirely.
    x_packed = jnp.transpose(x, (1, 0, 2, 3)).reshape(c4, B * nl).astype(compute_dtype)
    # Last-timestep slice, pre-transposed to (B*N, C4) so Fl comes out of its matmul
    # already in the row=(batch, n) layout the correlation needs.
    x_last = jnp.transpose(x[:, :, :, -1], (0, 2, 1)).reshape(B * n, c4).astype(compute_dtype)
    w = weight.astype(compute_dtype)
    b_col = bias.reshape(c, 1).astype(jnp.float32)
    b_row = bias.reshape(1, c).astype(jnp.float32)

    kernel = functools.partial(_stcc_kernel, n=n, nl=nl, bt=bt)

    cost = pl.CostEstimate(
        flops=2 * B * (c * c4 * nl + c * c4 * n) + 2 * steps * (bt * n) * c * (bt * nl),
        transcendentals=2 * B * c * c,
        bytes_accessed=(x_packed.size + x_last.size + w.size) * act_isz
        + (b_col.size + b_row.size) * 4 + B * n * nl * out_isz,
    )

    out = pl.pallas_call(
        kernel,
        out_shape=jax.ShapeDtypeStruct((B * n, nl), out_dtype),
        grid_spec=pltpu.PrefetchScalarGridSpec(
            num_scalar_prefetch=0,
            grid=(steps,),
            in_specs=[
                pl.BlockSpec((c4, bt * nl), lambda i: (0, i)),   # packed x slab
                pl.BlockSpec((bt * n, c4), lambda i: (i, 0)),    # last-timestep slab
                pl.BlockSpec((c, c4), lambda i: (0, 0)),         # conv weight (shared)
                pl.BlockSpec((c, 1), lambda i: (0, 0)),          # bias (column layout)
                pl.BlockSpec((1, c), lambda i: (0, 0)),          # bias (row layout)
            ],
            out_specs=pl.BlockSpec((bt * n, nl), lambda i: (i, 0)),
        ),
        compiler_params=pltpu.CompilerParams(
            dimension_semantics=("parallel",)),
        cost_estimate=cost,
    )(x_packed, x_last, w, b_col, b_row)

    # NOTE: VMEM budgeting above assumes the ~32 MiB scoped default (of 64 MiB physical
    # on v7x); for much larger N*L, tile the NL axis in multiples of 128 lanes or shrink
    # batches_per_step before reaching for vmem_limit_bytes.
    return out.reshape(B, n, n, l4)


def _reference(x, weight, bias):
    fc = jnp.einsum('oi,binl->bonl', weight, x) + bias[None, :, None, None]
    fl = fc[:, :, :, -1]
    xy = jnp.einsum('bcn,bcmt->bnmt', fl, fc)
    xx = jnp.sqrt(jnp.einsum('bcn,bcn->bc', fl, fl))
    yy = jnp.sqrt(jnp.einsum('bcnt,bcnt->bc', fc, fc))
    l2 = jnp.einsum('bc,bc->b', xx, yy)[:, None, None, None]
    return xy / l2


if __name__ == "__main__":
    # Module config: in_dim = 16  ->  conv out channels = in_dim // 4 = 4.
    B, IN_DIM, N, L = 4, 16, 16, 8
    C = IN_DIM // 4

    key = jax.random.PRNGKey(0)
    kx, kw, kb = jax.random.split(key, 3)
    x = jax.random.normal(kx, (B, IN_DIM, N, L), dtype=jnp.float32)
    # Synthetic conv params (torch Conv2d weight (C, IN_DIM, 1, 1) -> (C, IN_DIM)).
    weight = 0.1 * jax.random.normal(kw, (C, IN_DIM), dtype=jnp.float32)
    bias = 0.05 * jax.random.normal(kb, (C,), dtype=jnp.float32)

    stcc = jax.jit(spatio_temporal_correlation)
    out = stcc(x, weight, bias)
    out = jax.block_until_ready(out)

    # Reference with the same bf16 input quantization (the kernel accumulates in f32).
    xq = x.astype(jnp.bfloat16).astype(jnp.float32)
    wq = weight.astype(jnp.bfloat16).astype(jnp.float32)
    with jax.default_matmul_precision('highest'):
        ref = _reference(xq, wq, bias)

    assert out.shape == (B, N, N, L), out.shape
    assert jnp.allclose(out, ref, rtol=2e-2, atol=2e-4), \
        float(jnp.max(jnp.abs(out - ref)))

    print("KERNEL_OK")
</pallas_src>

<mosaic_0001>
module attributes {stable_mosaic.version = 11 : i64} {
  func.func @_stcc_kernel(%arg0: i32, %arg1: memref<16x512xbf16, #tpu.memory_space<vmem>>, %arg2: memref<64x16xbf16, #tpu.memory_space<vmem>>, %arg3: memref<4x16xbf16, #tpu.memory_space<vmem>>, %arg4: memref<4x1xf32, #tpu.memory_space<vmem>>, %arg5: memref<1x4xf32, #tpu.memory_space<vmem>>, %arg6: memref<64x128xf32, #tpu.memory_space<vmem>>) attributes {dimension_semantics = [#tpu.dimension_semantics<parallel>], iteration_bounds = array<i64: 1>, scalar_prefetch = 0 : i64, scratch_operands = 0 : i64, tpu.core_type = #tpu.core_type<tc>, window_params = [{transform_indices = @transform_0, window_bounds = array<i64: 16, 512>}, {transform_indices = @transform_1, window_bounds = array<i64: 64, 16>}, {pipeline_mode = #tpu.pipeline_mode<synchronous>, transform_indices = @transform_2, window_bounds = array<i64: 4, 16>}, {pipeline_mode = #tpu.pipeline_mode<synchronous>, transform_indices = @transform_3, window_bounds = array<i64: 4, 1>}, {pipeline_mode = #tpu.pipeline_mode<synchronous>, transform_indices = @transform_4, window_bounds = array<i64: 1, 4>}, {transform_indices = @transform_5, window_bounds = array<i64: 64, 128>}]} {
    %c0 = arith.constant 0 : index
    %c0_0 = arith.constant 0 : index
    %0 = vector.load %arg3[%c0, %c0_0] : memref<4x16xbf16, #tpu.memory_space<vmem>>, vector<4x16xbf16>
    %c0_1 = arith.constant 0 : index
    %c0_2 = arith.constant 0 : index
    %1 = vector.load %arg1[%c0_1, %c0_2] : memref<16x512xbf16, #tpu.memory_space<vmem>>, vector<16x512xbf16>
    %cst = arith.constant dense<0.000000e+00> : vector<4x512xf32>
    %2 = tpu.matmul %0, %1, %cst {dimension_numbers = #tpu.dot_dimension_numbers<[1], [0], [0], [1], [0, 0, 1, 1], [], []>} : vector<4x16xbf16>, vector<16x512xbf16>, vector<4x512xf32> -> vector<4x512xf32>
    %c0_3 = arith.constant 0 : index
    %c0_4 = arith.constant 0 : index
    %3 = vector.load %arg4[%c0_3, %c0_4] : memref<4x1xf32, #tpu.memory_space<vmem>>, vector<4x1xf32>
    %4 = vector.broadcast %3 : vector<4x1xf32> to vector<4x512xf32>
    %5 = arith.addf %2, %4 : vector<4x512xf32>
    %c0_5 = arith.constant 0 : index
    %c0_6 = arith.constant 0 : index
    %6 = vector.load %arg2[%c0_5, %c0_6] : memref<64x16xbf16, #tpu.memory_space<vmem>>, vector<64x16xbf16>
    %cst_7 = arith.constant dense<0.000000e+00> : vector<64x4xf32>
    %7 = tpu.matmul %6, %0, %cst_7 {dimension_numbers = #tpu.dot_dimension_numbers<[1], [1], [0], [0], [0, 0, 1, 0], [], []>} : vector<64x16xbf16>, vector<4x16xbf16>, vector<64x4xf32> -> vector<64x4xf32>
    %c0_8 = arith.constant 0 : index
    %c0_9 = arith.constant 0 : index
    %8 = vector.load %arg5[%c0_8, %c0_9] : memref<1x4xf32, #tpu.memory_space<vmem>>, vector<1x4xf32>
    %9 = vector.broadcast %8 : vector<1x4xf32> to vector<64x4xf32>
    %10 = arith.addf %7, %9 : vector<64x4xf32>
    %cst_10 = arith.constant dense<0.000000e+00> : vector<64x512xf32>
    %11 = tpu.matmul %10, %5, %cst_10 {dimension_numbers = #tpu.dot_dimension_numbers<[1], [0], [0], [1], [0, 0, 1, 1], [], []>} : vector<64x4xf32>, vector<4x512xf32>, vector<64x512xf32> -> vector<64x512xf32>
    %12 = tpu.iota {dimensions = array<i32: 0>} : vector<4x4xi32>
    %13 = tpu.iota {dimensions = array<i32: 1>} : vector<4x4xi32>
    %14 = arith.cmpi eq, %12, %13 : vector<4x4xi32>
    %15 = arith.extui %14 : vector<4x4xi1> to vector<4x4xi32>
    %16 = arith.sitofp %15 : vector<4x4xi32> to vector<4x4xf32>
    %17 = vector.extract_strided_slice %10 {offsets = [0, 0], sizes = [16, 4], strides = [1, 1]} : vector<64x4xf32> to vector<16x4xf32>
    %18 = vector.extract_strided_slice %5 {offsets = [0, 0], sizes = [4, 128], strides = [1, 1]} : vector<4x512xf32> to vector<4x128xf32>
    %19 = arith.mulf %17, %17 : vector<16x4xf32>
    %cst_11 = arith.constant dense<0.000000e+00> : vector<4xf32>
    %20 = vector.multi_reduction <add>, %19, %cst_11 [0] : vector<16x4xf32> to vector<4xf32>
    %21 = vector.shape_cast %20 : vector<4xf32> to vector<1x4xf32>
    %22 = arith.mulf %18, %18 : vector<4x128xf32>
    %cst_12 = arith.constant dense<0.000000e+00> : vector<4xf32>
    %23 = vector.multi_reduction <add>, %22, %cst_12 [1] : vector<4x128xf32> to vector<4xf32>
    %24 = vector.shape_cast %23 : vector<4xf32> to vector<4x1xf32>
    %25 = vector.broadcast %24 : vector<4x1xf32> to vector<4x4xf32>
    %26 = vector.broadcast %21 : vector<1x4xf32> to vector<4x4xf32>
    %27 = arith.mulf %25, %26 : vector<4x4xf32>
    %28 = math.sqrt %27 : vector<4x4xf32>
    %29 = arith.mulf %28, %16 : vector<4x4xf32>
    %30 = vector.shape_cast %29 : vector<4x4xf32> to vector<1x4x4xf32>
    %cst_13 = arith.constant dense<0.000000e+00> : vector<1xf32>
    %31 = vector.multi_reduction <add>, %30, %cst_13 [1, 2] : vector<1x4x4xf32> to vector<1xf32>
    %32 = vector.shape_cast %31 : vector<1xf32> to vector<1x1x1xf32>
    %33 = vector.extract %32[0, 0, 0] : f32 from vector<1x1x1xf32>
    %cst_14 = arith.constant 1.000000e+00 : f32
    %34 = arith.divf %cst_14, %33 : f32
    %35 = vector.extract_strided_slice %11 {offsets = [0, 0], sizes = [16, 128], strides = [1, 1]} : vector<64x512xf32> to vector<16x128xf32>
    %36 = vector.broadcast %34 : f32 to vector<16x128xf32>
    %37 = arith.mulf %35, %36 : vector<16x128xf32>
    %c0_15 = arith.constant 0 : index
    %c0_16 = arith.constant 0 : index
    %38 = vector.load %arg6[%c0_15, %c0_16] : memref<64x128xf32, #tpu.memory_space<vmem>>, vector<16x128xf32>
    tpu.vector_store %arg6[%c0_15, %c0_16], %37 {strides = array<i32>} : memref<64x128xf32, #tpu.memory_space<vmem>>, vector<16x128xf32>,
    %39 = vector.extract_strided_slice %10 {offsets = [16, 0], sizes = [16, 4], strides = [1, 1]} : vector<64x4xf32> to vector<16x4xf32>
    %40 = vector.extract_strided_slice %5 {offsets = [0, 128], sizes = [4, 128], strides = [1, 1]} : vector<4x512xf32> to vector<4x128xf32>
    %41 = arith.mulf %39, %39 : vector<16x4xf32>
    %cst_17 = arith.constant dense<0.000000e+00> : vector<4xf32>
    %42 = vector.multi_reduction <add>, %41, %cst_17 [0] : vector<16x4xf32> to vector<4xf32>
    %43 = vector.shape_cast %42 : vector<4xf32> to vector<1x4xf32>
    %44 = arith.mulf %40, %40 : vector<4x128xf32>
    %cst_18 = arith.constant dense<0.000000e+00> : vector<4xf32>
    %45 = vector.multi_reduction <add>, %44, %cst_18 [1] : vector<4x128xf32> to vector<4xf32>
    %46 = vector.shape_cast %45 : vector<4xf32> to vector<4x1xf32>
    %47 = vector.broadcast %46 : vector<4x1xf32> to vector<4x4xf32>
    %48 = vector.broadcast %43 : vector<1x4xf32> to vector<4x4xf32>
    %49 = arith.mulf %47, %48 : vector<4x4xf32>
    %50 = math.sqrt %49 : vector<4x4xf32>
    %51 = arith.mulf %50, %16 : vector<4x4xf32>
    %52 = vector.shape_cast %51 : vector<4x4xf32> to vector<1x4x4xf32>
    %cst_19 = arith.constant dense<0.000000e+00> : vector<1xf32>
    %53 = vector.multi_reduction <add>, %52, %cst_19 [1, 2] : vector<1x4x4xf32> to vector<1xf32>
    %54 = vector.shape_cast %53 : vector<1xf32> to vector<1x1x1xf32>
    %55 = vector.extract %54[0, 0, 0] : f32 from vector<1x1x1xf32>
    %cst_20 = arith.constant 1.000000e+00 : f32
    %56 = arith.divf %cst_20, %55 : f32
    %57 = vector.extract_strided_slice %11 {offsets = [16, 128], sizes = [16, 128], strides = [1, 1]} : vector<64x512xf32> to vector<16x128xf32>
    %58 = vector.broadcast %56 : f32 to vector<16x128xf32>
    %59 = arith.mulf %57, %58 : vector<16x128xf32>
    %c16 = arith.constant 16 : index
    %c0_21 = arith.constant 0 : index
    %60 = vector.load %arg6[%c16, %c0_21] : memref<64x128xf32, #tpu.memory_space<vmem>>, vector<16x128xf32>
    tpu.vector_store %arg6[%c16, %c0_21], %59 {strides = array<i32>} : memref<64x128xf32, #tpu.memory_space<vmem>>, vector<16x128xf32>,
    %61 = vector.extract_strided_slice %10 {offsets = [32, 0], sizes = [16, 4], strides = [1, 1]} : vector<64x4xf32> to vector<16x4xf32>
    %62 = vector.extract_strided_slice %5 {offsets = [0, 256], sizes = [4, 128], strides = [1, 1]} : vector<4x512xf32> to vector<4x128xf32>
    %63 = arith.mulf %61, %61 : vector<16x4xf32>
    %cst_22 = arith.constant dense<0.000000e+00> : vector<4xf32>
    %64 = vector.multi_reduction <add>, %63, %cst_22 [0] : vector<16x4xf32> to vector<4xf32>
    %65 = vector.shape_cast %64 : vector<4xf32> to vector<1x4xf32>
    %66 = arith.mulf %62, %62 : vector<4x128xf32>
    %cst_23 = arith.constant dense<0.000000e+00> : vector<4xf32>
    %67 = vector.multi_reduction <add>, %66, %cst_23 [1] : vector<4x128xf32> to vector<4xf32>
    %68 = vector.shape_cast %67 : vector<4xf32> to vector<4x1xf32>
    %69 = vector.broadcast %68 : vector<4x1xf32> to vector<4x4xf32>
    %70 = vector.broadcast %65 : vector<1x4xf32> to vector<4x4xf32>
    %71 = arith.mulf %69, %70 : vector<4x4xf32>
    %72 = math.sqrt %71 : vector<4x4xf32>
    %73 = arith.mulf %72, %16 : vector<4x4xf32>
    %74 = vector.shape_cast %73 : vector<4x4xf32> to vector<1x4x4xf32>
    %cst_24 = arith.constant dense<0.000000e+00> : vector<1xf32>
    %75 = vector.multi_reduction <add>, %74, %cst_24 [1, 2] : vector<1x4x4xf32> to vector<1xf32>
    %76 = vector.shape_cast %75 : vector<1xf32> to vector<1x1x1xf32>
    %77 = vector.extract %76[0, 0, 0] : f32 from vector<1x1x1xf32>
    %cst_25 = arith.constant 1.000000e+00 : f32
    %78 = arith.divf %cst_25, %77 : f32
    %79 = vector.extract_strided_slice %11 {offsets = [32, 256], sizes = [16, 128], strides = [1, 1]} : vector<64x512xf32> to vector<16x128xf32>
    %80 = vector.broadcast %78 : f32 to vector<16x128xf32>
    %81 = arith.mulf %79, %80 : vector<16x128xf32>
    %c32 = arith.constant 32 : index
    %c0_26 = arith.constant 0 : index
    %82 = vector.load %arg6[%c32, %c0_26] : memref<64x128xf32, #tpu.memory_space<vmem>>, vector<16x128xf32>
    tpu.vector_store %arg6[%c32, %c0_26], %81 {strides = array<i32>} : memref<64x128xf32, #tpu.memory_space<vmem>>, vector<16x128xf32>,
    %83 = vector.extract_strided_slice %10 {offsets = [48, 0], sizes = [16, 4], strides = [1, 1]} : vector<64x4xf32> to vector<16x4xf32>
    %84 = vector.extract_strided_slice %5 {offsets = [0, 384], sizes = [4, 128], strides = [1, 1]} : vector<4x512xf32> to vector<4x128xf32>
    %85 = arith.mulf %83, %83 : vector<16x4xf32>
    %cst_27 = arith.constant dense<0.000000e+00> : vector<4xf32>
    %86 = vector.multi_reduction <add>, %85, %cst_27 [0] : vector<16x4xf32> to vector<4xf32>
    %87 = vector.shape_cast %86 : vector<4xf32> to vector<1x4xf32>
    %88 = arith.mulf %84, %84 : vector<4x128xf32>
    %cst_28 = arith.constant dense<0.000000e+00> : vector<4xf32>
    %89 = vector.multi_reduction <add>, %88, %cst_28 [1] : vector<4x128xf32> to vector<4xf32>
    %90 = vector.shape_cast %89 : vector<4xf32> to vector<4x1xf32>
    %91 = vector.broadcast %90 : vector<4x1xf32> to vector<4x4xf32>
    %92 = vector.broadcast %87 : vector<1x4xf32> to vector<4x4xf32>
    %93 = arith.mulf %91, %92 : vector<4x4xf32>
    %94 = math.sqrt %93 : vector<4x4xf32>
    %95 = arith.mulf %94, %16 : vector<4x4xf32>
    %96 = vector.shape_cast %95 : vector<4x4xf32> to vector<1x4x4xf32>
    %cst_29 = arith.constant dense<0.000000e+00> : vector<1xf32>
    %97 = vector.multi_reduction <add>, %96, %cst_29 [1, 2] : vector<1x4x4xf32> to vector<1xf32>
    %98 = vector.shape_cast %97 : vector<1xf32> to vector<1x1x1xf32>
    %99 = vector.extract %98[0, 0, 0] : f32 from vector<1x1x1xf32>
    %cst_30 = arith.constant 1.000000e+00 : f32
    %100 = arith.divf %cst_30, %99 : f32
    %101 = vector.extract_strided_slice %11 {offsets = [48, 384], sizes = [16, 128], strides = [1, 1]} : vector<64x512xf32> to vector<16x128xf32>
    %102 = vector.broadcast %100 : f32 to vector<16x128xf32>
    %103 = arith.mulf %101, %102 : vector<16x128xf32>
    %c48 = arith.constant 48 : index
    %c0_31 = arith.constant 0 : index
    %104 = vector.load %arg6[%c48, %c0_31] : memref<64x128xf32, #tpu.memory_space<vmem>>, vector<16x128xf32>
    tpu.vector_store %arg6[%c48, %c0_31], %103 {strides = array<i32>} : memref<64x128xf32, #tpu.memory_space<vmem>>, vector<16x128xf32>,
    return
  }
  func.func @transform_0(%arg0: i32) -> (i32, i32) {
    %c0_i32 = arith.constant 0 : i32
    %c0_i32_0 = arith.constant 0 : i32
    return %c0_i32, %arg0 : i32, i32
  }
  func.func @transform_1(%arg0: i32) -> (i32, i32) {
    %c0_i32 = arith.constant 0 : i32
    %c0_i32_0 = arith.constant 0 : i32
    return %arg0, %c0_i32 : i32, i32
  }
  func.func @transform_2(%arg0: i32) -> (i32, i32) {
    %c0_i32 = arith.constant 0 : i32
    %c0_i32_0 = arith.constant 0 : i32
    %c0_i32_1 = arith.constant 0 : i32
    return %c0_i32, %c0_i32_0 : i32, i32
  }
  func.func @transform_3(%arg0: i32) -> (i32, i32) {
    %c0_i32 = arith.constant 0 : i32
    %c0_i32_0 = arith.constant 0 : i32
    %c0_i32_1 = arith.constant 0 : i32
    return %c0_i32, %c0_i32_0 : i32, i32
  }
  func.func @transform_4(%arg0: i32) -> (i32, i32) {
    %c0_i32 = arith.constant 0 : i32
    %c0_i32_0 = arith.constant 0 : i32
    %c0_i32_1 = arith.constant 0 : i32
    return %c0_i32, %c0_i32_0 : i32, i32
  }
  func.func @transform_5(%arg0: i32) -> (i32, i32) {
    %c0_i32 = arith.constant 0 : i32
    %c0_i32_0 = arith.constant 0 : i32
    return %arg0, %c0_i32 : i32, i32
  }
}

</mosaic_0001>

<llo_original>
// kernel: spatio_temporal_correlation.1
$region0: #{spatio_temporal_correlation.1}
  #allocation0 [shape = 'u32[]', space=smem, size = 0x4, offset = 0x4, fixed_abs, tag = 'smem constant byte address 0x4 - core index']
  #allocation1 [shape = 'u32[144,128]{1,0:T(1,128)}', space=vmem, size = 0x12000, scoped, tag = 'internal scratch']
  %s0 = inlined_call_operand.vmem [shape: bf16[16,512], index: 0, kind: input, shape index: {}]
  %s1 = inlined_call_operand.vmem [shape: bf16[64,16], index: 1, kind: input, shape index: {}]
  %s2 = inlined_call_operand.vmem [shape: bf16[4,16], index: 2, kind: input, shape index: {}]
  %s3 = inlined_call_operand.vmem [shape: f32[4,1], index: 3, kind: input, shape index: {}]
  %s4 = inlined_call_operand.vmem [shape: f32[1,4], index: 4, kind: input, shape index: {}]
  %s5 = inlined_call_operand.vmem [shape: f32[64,128], index: 5, kind: output, shape index: {}]
  %s6 = sld [smem:[#allocation0]]
  $region30: #{spatio_temporal_correlation.1} parent=0
    _
  %s8 = ssub.s32 1, %s6
  %s9 = scalar_select 0, %s8, %s6
  // Predicated region
  $region2: #{spatio_temporal_correlation.1} parent=0 // pred_check
    _
  $region3: #{spatio_temporal_correlation.1} parent=0 // pred_check_branch
    %11 = sbr.rel (0) target = $region5
  $region4: #{spatio_temporal_correlation.1} parent=0 // pred_region
    _
  $region5: #{spatio_temporal_correlation.1} parent=0 // pred_fallthru
    _
  // Predicated region
  $region6: #{spatio_temporal_correlation.1} parent=0 // pred_check
    _
  $region7: #{spatio_temporal_correlation.1} parent=0 // pred_check_branch
    %13 = sbr.rel (0) target = $region9
  $region8: #{spatio_temporal_correlation.1} parent=0 // pred_region
    _
  $region9: #{spatio_temporal_correlation.1} parent=0 // pred_fallthru
    _
  // Predicated region
  $region10: #{spatio_temporal_correlation.1} parent=0 // pred_check
    _
  $region11: #{spatio_temporal_correlation.1} parent=0 // pred_check_branch
    %15 = sbr.rel (0) target = $region13
  $region12: #{spatio_temporal_correlation.1} parent=0 // pred_region
    _
  $region13: #{spatio_temporal_correlation.1} parent=0 // pred_fallthru
    _
  // Predicated region
  $region14: #{spatio_temporal_correlation.1} parent=0 // pred_check
    _
  $region15: #{spatio_temporal_correlation.1} parent=0 // pred_check_branch
    %17 = sbr.rel (0) target = $region17
  $region16: #{spatio_temporal_correlation.1} parent=0 // pred_region
    _
  $region17: #{spatio_temporal_correlation.1} parent=0 // pred_fallthru
    _
  // Predicated region
  $region18: #{spatio_temporal_correlation.1} parent=0 // pred_check
    _
  $region19: #{spatio_temporal_correlation.1} parent=0 // pred_check_branch
    %19 = sbr.rel (0) target = $region21
  $region20: #{spatio_temporal_correlation.1} parent=0 // pred_region
    _
  $region21: #{spatio_temporal_correlation.1} parent=0 // pred_fallthru
    _
  %v21 = vld [vmem:[%s2] sm:$0x3]
  %v22 = vld [vmem:[%s0] sm:$0xff]
  %v23 = vld [vmem:[%s0 + $0x8] sm:$0xff]
  %v24 = vld [vmem:[%s0 + $0x10] sm:$0xff]
  %v25 = vld [vmem:[%s0 + $0x18] sm:$0xff]
  %v26 = vld [vmem:[%s3] sm:$0xf]
  %28 = vset.pattern.permute.xlu0 0
  %29 = vperm.xlu0 %28, %v26
  %v30 = vpop.permute.xlu0 %29
  %v36 = vunpack.c.l.b16 %v22
  %v37 = vunpack.c.h.b16 %v22
  %v38 = vunpack.c.l.b16 %v23
  %v39 = vunpack.c.h.b16 %v23
  %v40 = vunpack.c.l.b16 %v24
  %v41 = vunpack.c.h.b16 %v24
  %v42 = vunpack.c.l.b16 %v25
  %v43 = vunpack.c.h.b16 %v25
  %v44 = vpack.c.b16 %v40, %v36
  %v45 = vpack.c.b16 %v41, %v37
  %v46 = vpack.c.b16 %v42, %v38
  %v47 = vpack.c.b16 %v43, %v39
  %vm52 = vcmask 130048
  %v54 = vsel %vm52, %v21, 0
  %56 = vmatprep.subr.bf16.mxu0 %v45
  %57 = vmatpush1.bf16.msra.mxu0 %v44
  %58 = vmatprep.subr.bf16.mxu0 0
  %59 = vmatpush1.bf16.msra.mxu0 0
  %60 = vmatprep.subr.bf16.mxu0 0
  %61 = vmatpush1.bf16.msra.mxu0 0
  %62 = vmatprep.subr.bf16.mxu0 0
  %63 = vmatpush1.bf16.msra.mxu0 0
  %64 = vmatprep.subr.bf16.mxu0 0
  %65 = vmatpush1.bf16.msra.mxu0 0
  %66 = vmatprep.subr.bf16.mxu0 0
  %67 = vmatpush1.bf16.msra.mxu0 0
  %68 = vmatprep.subr.bf16.mxu0 0
  %69 = vmatpush1.bf16.msra.mxu0 0
  %70 = vmatprep.subr.bf16.mxu0 0
  %71 = vmatpush1.bf16.msra.mxu0 0
  %72 = vmatprep.subr.bf16.mxu0 0
  %73 = vmatpush1.bf16.msra.mxu0 0
  %74 = vmatprep.subr.bf16.mxu0 0
  %75 = vmatpush1.bf16.msra.mxu0 0
  %76 = vmatprep.subr.bf16.mxu0 0
  %77 = vmatpush1.bf16.msra.mxu0 0
  %78 = vmatprep.subr.bf16.mxu0 0
  %79 = vmatpush1.bf16.msra.mxu0 0
  %80 = vmatprep.subr.bf16.mxu0 0
  %81 = vmatpush1.bf16.msra.mxu0 0
  %82 = vmatprep.subr.bf16.mxu0 0
  %83 = vmatpush1.bf16.msra.mxu0 0
  %84 = vmatprep.subr.bf16.mxu0 0
  %85 = vmatpush1.bf16.msra.mxu0 0
  %86 = vmatprep.subr.bf16.mxu0 0
  %87 = vmatpush1.bf16.msra.mxu0 0
  %88 = vmatprep.mubr.bf16.mxu0 0
  %89 = vmatmul.mubr.bf16.gmra.mrb[0].mxu0 %v54
  %v90 = vpop.f32.mrb[0].mxu0
  %v91 = vadd.f32 %v30, %v90
  %v92 = vpop.f32.mrb[0].mxu0
  %v93 = vadd.f32 %v30, %v92
  %v94 = vpop.f32.mrb[0].mxu0
  %v95 = vpop.f32.mrb[0].mxu0
  %96 = vdwg.mxu0
  %97 = vmatprep.subr.bf16.mxu0 %v47
  %98 = vmatpush1.bf16.msra.mxu0 %v46
  %99 = vmatprep.subr.bf16.mxu0 0
  %100 = vmatpush1.bf16.msra.mxu0 0
  %101 = vmatprep.subr.bf16.mxu0 0
  %102 = vmatpush1.bf16.msra.mxu0 0
  %103 = vmatprep.subr.bf16.mxu0 0
  %104 = vmatpush1.bf16.msra.mxu0 0
  %105 = vmatprep.subr.bf16.mxu0 0
  %106 = vmatpush1.bf16.msra.mxu0 0
  %107 = vmatprep.subr.bf16.mxu0 0
  %108 = vmatpush1.bf16.msra.mxu0 0
  %109 = vmatprep.subr.bf16.mxu0 0
  %110 = vmatpush1.bf16.msra.mxu0 0
  %111 = vmatprep.subr.bf16.mxu0 0
  %112 = vmatpush1.bf16.msra.mxu0 0
  %113 = vmatprep.subr.bf16.mxu0 0
  %114 = vmatpush1.bf16.msra.mxu0 0
  %115 = vmatprep.subr.bf16.mxu0 0
  %116 = vmatpush1.bf16.msra.mxu0 0
  %117 = vmatprep.subr.bf16.mxu0 0
  %118 = vmatpush1.bf16.msra.mxu0 0
  %119 = vmatprep.subr.bf16.mxu0 0
  %120 = vmatpush1.bf16.msra.mxu0 0
  %121 = vmatprep.subr.bf16.mxu0 0
  %122 = vmatpush1.bf16.msra.mxu0 0
  %123 = vmatprep.subr.bf16.mxu0 0
  %124 = vmatpush1.bf16.msra.mxu0 0
  %125 = vmatprep.subr.bf16.mxu0 0
  %126 = vmatpush1.bf16.msra.mxu0 0
  %127 = vmatprep.subr.bf16.mxu0 0
  %128 = vmatpush1.bf16.msra.mxu0 0
  %129 = vmatprep.mubr.bf16.mxu0 0
  %130 = vmatmul.mubr.bf16.gmra.mrb[0].mxu0 %v54
  %v131 = vpop.f32.mrb[0].mxu0
  %v132 = vadd.f32 %v30, %v131
  %v133 = vpop.f32.mrb[0].mxu0
  %v134 = vadd.f32 %v30, %v133
  %v135 = vpop.f32.mrb[0].mxu0
  %v136 = vpop.f32.mrb[0].mxu0
  %137 = vdwg.mxu0
  %v138 = vld [vmem:[%s1] sm:$0xf]
  %v139 = vld [vmem:[%s1 + $0x4] sm:$0xf]
  %v140 = vld [vmem:[%s1 + $0x8] sm:$0xf]
  %v141 = vld [vmem:[%s1 + $0xc] sm:$0xf]
  %v142 = vld [vmem:[%s1 + $0x10] sm:$0xf]
  %v143 = vld [vmem:[%s1 + $0x14] sm:$0xf]
  %v144 = vld [vmem:[%s1 + $0x18] sm:$0xf]
  %v145 = vld [vmem:[%s1 + $0x1c] sm:$0xf]
  %v146 = vld [vmem:[%s4] sm:$0x1]
  %v148 = vlaneseq
  %v149 = vshrl.u32 %v148, 7
  %v150 = vsub.s32 0, %v149
  %v151 = vrot.slane %v146, %v150
  %v161 = vunpack.c.l.b16 %v138
  %v162 = vunpack.c.l.b16 %v139
  %v163 = vunpack.c.l.b16 %v140
  %v164 = vunpack.c.l.b16 %v141
  %v165 = vunpack.c.l.b16 %v142
  %v166 = vunpack.c.l.b16 %v143
  %v167 = vunpack.c.l.b16 %v144
  %v168 = vunpack.c.l.b16 %v145
  %v169 = vpack.c.b16 %v162, %v161
  %v170 = vpack.c.b16 %v164, %v163
  %v171 = vpack.c.b16 %v166, %v165
  %v172 = vpack.c.b16 %v168, %v167
  %v174 = vsel %vm52, %v169, 0
  %v177 = vsel %vm52, %v170, 0
  %v180 = vsel %vm52, %v171, 0
  %v183 = vsel %vm52, %v172, 0
  %185 = vmatprep.subr.bf16.mxu0 0
  %186 = vmatpush1.bf16.xpose.msra.mxu0 %v54
  %187 = vmatprep.subr.bf16.mxu0 0
  %188 = vmatpush1.bf16.xpose.msra.mxu0 0
  %189 = vmatprep.subr.bf16.mxu0 0
  %190 = vmatpush1.bf16.xpose.msra.mxu0 0
  %191 = vmatprep.subr.bf16.mxu0 0
  %192 = vmatpush1.bf16.xpose.msra.mxu0 0
  %193 = vmatprep.subr.bf16.mxu0 0
  %194 = vmatpush1.bf16.xpose.msra.mxu0 0
  %195 = vmatprep.subr.bf16.mxu0 0
  %196 = vmatpush1.bf16.xpose.msra.mxu0 0
  %197 = vmatprep.subr.bf16.mxu0 0
  %198 = vmatpush1.bf16.xpose.msra.mxu0 0
  %199 = vmatprep.subr.bf16.mxu0 0
  %200 = vmatpush1.bf16.xpose.msra.mxu0 0
  %201 = vmatprep.subr.bf16.mxu0 0
  %202 = vmatpush1.bf16.xpose.msra.mxu0 0
  %203 = vmatprep.subr.bf16.mxu0 0
  %204 = vmatpush1.bf16.xpose.msra.mxu0 0
  %205 = vmatprep.subr.bf16.mxu0 0
  %206 = vmatpush1.bf16.xpose.msra.mxu0 0
  %207 = vmatprep.subr.bf16.mxu0 0
  %208 = vmatpush1.bf16.xpose.msra.mxu0 0
  %209 = vmatprep.subr.bf16.mxu0 0
  %210 = vmatpush1.bf16.xpose.msra.mxu0 0
  %211 = vmatprep.subr.bf16.mxu0 0
  %212 = vmatpush1.bf16.xpose.msra.mxu0 0
  %213 = vmatprep.subr.bf16.mxu0 0
  %214 = vmatpush1.bf16.xpose.msra.mxu0 0
  %215 = vmatprep.subr.bf16.mxu0 0
  %216 = vmatpush1.bf16.xpose.msra.mxu0 0
  %217 = vmatprep.mubr.bf16.mxu0 0
  %218 = vmatmul.mubr.bf16.gmra.mrb[0].mxu0 %v174
  %v219 = vpop.f32.mrb[0].mxu0
  %v220 = vadd.f32 %v151, %v219
  %v221 = vpop.f32.mrb[0].mxu0
  %v222 = vpop.f32.mrb[0].mxu0
  %v223 = vadd.f32 %v151, %v222
  %v224 = vpop.f32.mrb[0].mxu0
  %225 = vmatprep.mubr.bf16.mxu0 0
  %226 = vmatmul.mubr.bf16.gmra.mrb[0].mxu0 %v177
  %v227 = vpop.f32.mrb[0].mxu0
  %v228 = vadd.f32 %v151, %v227
  %v229 = vpop.f32.mrb[0].mxu0
  %v230 = vpop.f32.mrb[0].mxu0
  %v231 = vadd.f32 %v151, %v230
  %v232 = vpop.f32.mrb[0].mxu0
  %233 = vmatprep.mubr.bf16.mxu0 0
  %234 = vmatmul.mubr.bf16.gmra.mrb[0].mxu0 %v180
  %v235 = vpop.f32.mrb[0].mxu0
  %v236 = vadd.f32 %v151, %v235
  %v237 = vpop.f32.mrb[0].mxu0
  %v238 = vpop.f32.mrb[0].mxu0
  %v239 = vadd.f32 %v151, %v238
  %v240 = vpop.f32.mrb[0].mxu0
  %241 = vmatprep.mubr.bf16.mxu0 0
  %242 = vmatmul.mubr.bf16.gmra.mrb[0].mxu0 %v183
  %v243 = vpop.f32.mrb[0].mxu0
  %v244 = vadd.f32 %v151, %v243
  %v245 = vpop.f32.mrb[0].mxu0
  %v246 = vpop.f32.mrb[0].mxu0
  %v247 = vadd.f32 %v151, %v246
  %v248 = vpop.f32.mrb[0].mxu0
  %249 = vdwg.mxu0
  %vm250 = vcmask 31744
  %v252 = vsel %vm250, %v220, 0
  %v255 = vsel %vm250, %v223, 0
  %v258 = vsel %vm250, %v228, 0
  %v261 = vsel %vm250, %v231, 0
  %v264 = vsel %vm250, %v236, 0
  %v267 = vsel %vm250, %v239, 0
  %v270 = vsel %vm250, %v244, 0
  %v273 = vsel %vm250, %v247, 0
  %vm275 = vcmask 1043456
  %v277 = vsel %vm275, %v91, 0
  %v280 = vsel %vm275, %v93, 0
  %v283 = vsel %vm275, %v132, 0
  %v286 = vsel %vm275, %v134, 0
  %288 = vmatprep.subr.mxu0 %v280
  %289 = vmatpush1.msra.mxu0 %v277
  %290 = vmatprep.subr.mxu0 0.0
  %291 = vmatpush1.msra.mxu0 0.0
  %292 = vmatprep.subr.mxu0 0.0
  %293 = vmatpush1.msra.mxu0 0.0
  %294 = vmatprep.subr.mxu0 0.0
  %295 = vmatpush1.msra.mxu0 0.0
  %296 = vmatprep.subr.mxu0 0.0
  %297 = vmatpush1.msra.mxu0 0.0
  %298 = vmatprep.subr.mxu0 0.0
  %299 = vmatpush1.msra.mxu0 0.0
  %300 = vmatprep.subr.mxu0 0.0
  %301 = vmatpush1.msra.mxu0 0.0
  %302 = vmatprep.subr.mxu0 0.0
  %303 = vmatpush1.msra.mxu0 0.0
  %304 = vmatprep.subr.mxu0 0.0
  %305 = vmatpush1.msra.mxu0 0.0
  %306 = vmatprep.subr.mxu0 0.0
  %307 = vmatpush1.msra.mxu0 0.0
  %308 = vmatprep.subr.mxu0 0.0
  %309 = vmatpush1.msra.mxu0 0.0
  %310 = vmatprep.subr.mxu0 0.0
  %311 = vmatpush1.msra.mxu0 0.0
  %312 = vmatprep.subr.mxu0 0.0
  %313 = vmatpush1.msra.mxu0 0.0
  %314 = vmatprep.subr.mxu0 0.0
  %315 = vmatpush1.msra.mxu0 0.0
  %316 = vmatprep.subr.mxu0 0.0
  %317 = vmatpush1.msra.mxu0 0.0
  %318 = vmatprep.subr.mxu0 0.0
  %319 = vmatpush1.msra.mxu0 0.0
  %320 = vmatprep.subr.mxu0 0.0
  %321 = vmatpush1.msra.mxu0 0.0
  %322 = vmatprep.subr.mxu0 0.0
  %323 = vmatpush1.msra.mxu0 0.0
  %324 = vmatprep.subr.mxu0 0.0
  %325 = vmatpush1.msra.mxu0 0.0
  %326 = vmatprep.subr.mxu0 0.0
  %327 = vmatpush1.msra.mxu0 0.0
  %328 = vmatprep.subr.mxu0 0.0
  %329 = vmatpush1.msra.mxu0 0.0
  %330 = vmatprep.subr.mxu0 0.0
  %331 = vmatpush1.msra.mxu0 0.0
  %332 = vmatprep.subr.mxu0 0.0
  %333 = vmatpush1.msra.mxu0 0.0
  %334 = vmatprep.subr.mxu0 0.0
  %335 = vmatpush1.msra.mxu0 0.0
  %336 = vmatprep.subr.mxu0 0.0
  %337 = vmatpush1.msra.mxu0 0.0
  %338 = vmatprep.subr.mxu0 0.0
  %339 = vmatpush1.msra.mxu0 0.0
  %340 = vmatprep.subr.mxu0 0.0
  %341 = vmatpush1.msra.mxu0 0.0
  %342 = vmatprep.subr.mxu0 0.0
  %343 = vmatpush1.msra.mxu0 0.0
  %344 = vmatprep.subr.mxu0 0.0
  %345 = vmatpush1.msra.mxu0 0.0
  %346 = vmatprep.subr.mxu0 0.0
  %347 = vmatpush1.msra.mxu0 0.0
  %348 = vmatprep.subr.mxu0 0.0
  %349 = vmatpush1.msra.mxu0 0.0
  %350 = vmatprep.subr.mxu0 0.0
  %351 = vmatpush1.msra.mxu0 0.0
  %352 = vmatprep.mubr.f32.mxu0 0.0
  %353 = vmatmul.mubr.f32.gmra.mrb[0].mxu0 %v252
  %v354 = vpop.f32.mrb[0].mxu0
  %v355 = vadd.f32 0.0, %v354
  %v356 = vpop.f32.mrb[0].mxu0
  %357 = vmatprep.mubr.f32.mxu0 0.0
  %358 = vmatmul.mubr.f32.gmra.mrb[0].mxu0 %v255
  %v359 = vpop.f32.mrb[0].mxu0
  %v360 = vadd.f32 0.0, %v359
  %v361 = vpop.f32.mrb[0].mxu0
  %362 = vmatprep.mubr.f32.mxu0 0.0
  %363 = vmatmul.mubr.f32.gmra.mrb[0].mxu0 %v258
  %v364 = vpop.f32.mrb[0].mxu0
  %v365 = vpop.f32.mrb[0].mxu0
  %v366 = vadd.f32 0.0, %v365
  %367 = vmatprep.mubr.f32.mxu0 0.0
  %368 = vmatmul.mubr.f32.gmra.mrb[0].mxu0 %v261
  %v369 = vpop.f32.mrb[0].mxu0
  %v370 = vpop.f32.mrb[0].mxu0
  %v371 = vadd.f32 0.0, %v370
  %372 = vmatprep.mubr.f32.mxu0 0.0
  %373 = vmatmul.mubr.f32.gmra.mrb[0].mxu0 %v264
  %v374 = vpop.f32.mrb[0].mxu0
  %v375 = vpop.f32.mrb[0].mxu0
  %376 = vmatprep.mubr.f32.mxu0 0.0
  %377 = vmatmul.mubr.f32.gmra.mrb[0].mxu0 %v267
  %v378 = vpop.f32.mrb[0].mxu0
  %v379 = vpop.f32.mrb[0].mxu0
  %380 = vmatprep.mubr.f32.mxu0 0.0
  %381 = vmatmul.mubr.f32.gmra.mrb[0].mxu0 %v270
  %v382 = vpop.f32.mrb[0].mxu0
  %v383 = vpop.f32.mrb[0].mxu0
  %384 = vmatprep.mubr.f32.mxu0 0.0
  %385 = vmatmul.mubr.f32.gmra.mrb[0].mxu0 %v273
  %v386 = vpop.f32.mrb[0].mxu0
  %v387 = vpop.f32.mrb[0].mxu0
  %388 = vdwg.mxu0
  %389 = vmatprep.subr.mxu0 %v286
  %390 = vmatpush1.msra.mxu0 %v283
  %391 = vmatprep.subr.mxu0 0.0
  %392 = vmatpush1.msra.mxu0 0.0
  %393 = vmatprep.subr.mxu0 0.0
  %394 = vmatpush1.msra.mxu0 0.0
  %395 = vmatprep.subr.mxu0 0.0
  %396 = vmatpush1.msra.mxu0 0.0
  %397 = vmatprep.subr.mxu0 0.0
  %398 = vmatpush1.msra.mxu0 0.0
  %399 = vmatprep.subr.mxu0 0.0
  %400 = vmatpush1.msra.mxu0 0.0
  %401 = vmatprep.subr.mxu0 0.0
  %402 = vmatpush1.msra.mxu0 0.0
  %403 = vmatprep.subr.mxu0 0.0
  %404 = vmatpush1.msra.mxu0 0.0
  %405 = vmatprep.subr.mxu0 0.0
  %406 = vmatpush1.msra.mxu0 0.0
  %407 = vmatprep.subr.mxu0 0.0
  %408 = vmatpush1.msra.mxu0 0.0
  %409 = vmatprep.subr.mxu0 0.0
  %410 = vmatpush1.msra.mxu0 0.0
  %411 = vmatprep.subr.mxu0 0.0
  %412 = vmatpush1.msra.mxu0 0.0
  %413 = vmatprep.subr.mxu0 0.0
  %414 = vmatpush1.msra.mxu0 0.0
  %415 = vmatprep.subr.mxu0 0.0
  %416 = vmatpush1.msra.mxu0 0.0
  %417 = vmatprep.subr.mxu0 0.0
  %418 = vmatpush1.msra.mxu0 0.0
  %419 = vmatprep.subr.mxu0 0.0
  %420 = vmatpush1.msra.mxu0 0.0
  %421 = vmatprep.subr.mxu0 0.0
  %422 = vmatpush1.msra.mxu0 0.0
  %423 = vmatprep.subr.mxu0 0.0
  %424 = vmatpush1.msra.mxu0 0.0
  %425 = vmatprep.subr.mxu0 0.0
  %426 = vmatpush1.msra.mxu0 0.0
  %427 = vmatprep.subr.mxu0 0.0
  %428 = vmatpush1.msra.mxu0 0.0
  %429 = vmatprep.subr.mxu0 0.0
  %430 = vmatpush1.msra.mxu0 0.0
  %431 = vmatprep.subr.mxu0 0.0
  %432 = vmatpush1.msra.mxu0 0.0
  %433 = vmatprep.subr.mxu0 0.0
  %434 = vmatpush1.msra.mxu0 0.0
  %435 = vmatprep.subr.mxu0 0.0
  %436 = vmatpush1.msra.mxu0 0.0
  %437 = vmatprep.subr.mxu0 0.0
  %438 = vmatpush1.msra.mxu0 0.0
  %439 = vmatprep.subr.mxu0 0.0
  %440 = vmatpush1.msra.mxu0 0.0
  %441 = vmatprep.subr.mxu0 0.0
  %442 = vmatpush1.msra.mxu0 0.0
  %443 = vmatprep.subr.mxu0 0.0
  %444 = vmatpush1.msra.mxu0 0.0
  %445 = vmatprep.subr.mxu0 0.0
  %446 = vmatpush1.msra.mxu0 0.0
  %447 = vmatprep.subr.mxu0 0.0
  %448 = vmatpush1.msra.mxu0 0.0
  %449 = vmatprep.subr.mxu0 0.0
  %450 = vmatpush1.msra.mxu0 0.0
  %451 = vmatprep.subr.mxu0 0.0
  %452 = vmatpush1.msra.mxu0 0.0
  %453 = vmatprep.mubr.f32.mxu0 0.0
  %454 = vmatmul.mubr.f32.gmra.mrb[0].mxu0 %v252
  %v455 = vpop.f32.mrb[0].mxu0
  %v456 = vpop.f32.mrb[0].mxu0
  %457 = vmatprep.mubr.f32.mxu0 0.0
  %458 = vmatmul.mubr.f32.gmra.mrb[0].mxu0 %v255
  %v459 = vpop.f32.mrb[0].mxu0
  %v460 = vpop.f32.mrb[0].mxu0
  %461 = vmatprep.mubr.f32.mxu0 0.0
  %462 = vmatmul.mubr.f32.gmra.mrb[0].mxu0 %v258
  %v463 = vpop.f32.mrb[0].mxu0
  %v464 = vpop.f32.mrb[0].mxu0
  %465 = vmatprep.mubr.f32.mxu0 0.0
  %466 = vmatmul.mubr.f32.gmra.mrb[0].mxu0 %v261
  %v467 = vpop.f32.mrb[0].mxu0
  %v468 = vpop.f32.mrb[0].mxu0
  %469 = vmatprep.mubr.f32.mxu0 0.0
  %470 = vmatmul.mubr.f32.gmra.mrb[0].mxu0 %v264
  %v471 = vpop.f32.mrb[0].mxu0
  %v472 = vadd.f32 0.0, %v471
  %v473 = vpop.f32.mrb[0].mxu0
  %474 = vmatprep.mubr.f32.mxu0 0.0
  %475 = vmatmul.mubr.f32.gmra.mrb[0].mxu0 %v267
  %v476 = vpop.f32.mrb[0].mxu0
  %v477 = vadd.f32 0.0, %v476
  %v478 = vpop.f32.mrb[0].mxu0
  %479 = vmatprep.mubr.f32.mxu0 0.0
  %480 = vmatmul.mubr.f32.gmra.mrb[0].mxu0 %v270
  %v481 = vpop.f32.mrb[0].mxu0
  %v482 = vpop.f32.mrb[0].mxu0
  %v483 = vadd.f32 0.0, %v482
  %484 = vmatprep.mubr.f32.mxu0 0.0
  %485 = vmatmul.mubr.f32.gmra.mrb[0].mxu0 %v273
  %v486 = vpop.f32.mrb[0].mxu0
  %v487 = vpop.f32.mrb[0].mxu0
  %v488 = vadd.f32 0.0, %v487
  %489 = vdwg.mxu0
  %v490 = vlaneseq
  %v491 = vshrl.u32 %v490, 7
  %v492 = vlaneseq
  %v493 = vand.u32 %v492, 127
  %vm494 = vcmp.eq.s32.totalorder %v491, %v493
  %v495 = vsel %vm494, 1, 0
  %v496 = vcvt.s32.f32 %v495
  %v497 = vmul.f32 %v220, %v220
  %v498 = vmul.f32 %v223, %v223
  %v499 = vsel %vm250, %v497, 0.0
  %v500 = vsel %vm250, %v498, 0.0
  %v501 = vadd.f32 %v499, %v500
  %v502 = vrot.slane %v501, 4
  %v503 = vadd.f32 %v501, %v502
  %v504 = vrot.slane %v503, 2
  %v505 = vadd.f32 %v503, %v504
  %v506 = vrot.slane %v505, 1
  %v507 = vadd.f32 %v505, %v506
  %v508 = vmul.f32 %v91, %v91
  %v509 = vsel %vm275, %v508, 0.0
  %510 = vadd.xlane.f32.xlu0 %v509
  %v511 = vpop.xlane.xlu0 %510
  %v512 = vmul.f32 %v511, %v507
  %v513 = vrsqrt.pop %v512
  %v514 = vmul.f32 %v512, %v513
  %vm515 = vcmp.eq.f32.partialorder %v512, inf
  %v516 = vsel %vm515, %v512, %v514
  %vm517 = vcmp.eq.f32.partialorder %v512, 0.0
  %v518 = vand.u32 %v512, 2147483648
  %v519 = vsel %vm517, %v518, %v516
  %v520 = vmul.f32 %v519, %v496
  %vm521 = vcmask 27648
  %v522 = vsel %vm521, %v520, 0.0
  %523 = vadd.xlane.f32.xlu0 %v522
  %v524 = vpop.xlane.xlu0 %523
  %v525 = vrot.slane %v524, 4
  %v526 = vadd.f32 %v524, %v525
  %v527 = vrot.slane %v526, 2
  %v528 = vadd.f32 %v526, %v527
  %v529 = vrot.slane %v528, 1
  %v530 = vadd.f32 %v528, %v529
  %s531 = vtos %v530
  %v532 = vstv %s531
  %v533 = vrcp.pop %v532
  %s534 = vtos %v533
  %v535 = vstv %s534
  %v536 = vmul.f32 %v355, %v535
  %v537 = vmul.f32 %v360, %v535
  %538 = vst [vmem:[%s5] sm:$0xff] %v536
  %539 = vst [vmem:[%s5 + $0x8] sm:$0xff] %v537
  %v540 = vmul.f32 %v228, %v228
  %v541 = vmul.f32 %v231, %v231
  %v542 = vsel %vm250, %v540, 0.0
  %v543 = vsel %vm250, %v541, 0.0
  %v544 = vadd.f32 %v542, %v543
  %v545 = vrot.slane %v544, 4
  %v546 = vadd.f32 %v544, %v545
  %v547 = vrot.slane %v546, 2
  %v548 = vadd.f32 %v546, %v547
  %v549 = vrot.slane %v548, 1
  %v550 = vadd.f32 %v548, %v549
  %v551 = vmul.f32 %v93, %v93
  %v552 = vsel %vm275, %v551, 0.0
  %553 = vadd.xlane.f32.xlu0 %v552
  %v554 = vpop.xlane.xlu0 %553
  %v555 = vmul.f32 %v554, %v550
  %v556 = vrsqrt.pop %v555
  %v557 = vmul.f32 %v555, %v556
  %vm558 = vcmp.eq.f32.partialorder %v555, inf
  %v559 = vsel %vm558, %v555, %v557
  %vm560 = vcmp.eq.f32.partialorder %v555, 0.0
  %v561 = vand.u32 %v555, 2147483648
  %v562 = vsel %vm560, %v561, %v559
  %v563 = vmul.f32 %v562, %v496
  %v564 = vsel %vm521, %v563, 0.0
  %565 = vadd.xlane.f32.xlu0 %v564
  %v566 = vpop.xlane.xlu0 %565
  %v567 = vrot.slane %v566, 4
  %v568 = vadd.f32 %v566, %v567
  %v569 = vrot.slane %v568, 2
  %v570 = vadd.f32 %v568, %v569
  %v571 = vrot.slane %v570, 1
  %v572 = vadd.f32 %v570, %v571
  %s573 = vtos %v572
  %v574 = vstv %s573
  %v575 = vrcp.pop %v574
  %s576 = vtos %v575
  %v577 = vstv %s576
  %v578 = vmul.f32 %v366, %v577
  %v579 = vmul.f32 %v371, %v577
  %580 = vst [vmem:[%s5 + $0x10] sm:$0xff] %v578
  %581 = vst [vmem:[%s5 + $0x18] sm:$0xff] %v579
  %v582 = vmul.f32 %v236, %v236
  %v583 = vmul.f32 %v239, %v239
  %v584 = vsel %vm250, %v582, 0.0
  %v585 = vsel %vm250, %v583, 0.0
  %v586 = vadd.f32 %v584, %v585
  %v587 = vrot.slane %v586, 4
  %v588 = vadd.f32 %v586, %v587
  %v589 = vrot.slane %v588, 2
  %v590 = vadd.f32 %v588, %v589
  %v591 = vrot.slane %v590, 1
  %v592 = vadd.f32 %v590, %v591
  %v593 = vmul.f32 %v132, %v132
  %v594 = vsel %vm275, %v593, 0.0
  %595 = vadd.xlane.f32.xlu0 %v594
  %v596 = vpop.xlane.xlu0 %595
  %v597 = vmul.f32 %v596, %v592
  %v598 = vrsqrt.pop %v597
  %v599 = vmul.f32 %v597, %v598
  %vm600 = vcmp.eq.f32.partialorder %v597, inf
  %v601 = vsel %vm600, %v597, %v599
  %vm602 = vcmp.eq.f32.partialorder %v597, 0.0
  %v603 = vand.u32 %v597, 2147483648
  %v604 = vsel %vm602, %v603, %v601
  %v605 = vmul.f32 %v604, %v496
  %v606 = vsel %vm521, %v605, 0.0
  %607 = vadd.xlane.f32.xlu0 %v606
  %v608 = vpop.xlane.xlu0 %607
  %v609 = vrot.slane %v608, 4
  %v610 = vadd.f32 %v608, %v609
  %v611 = vrot.slane %v610, 2
  %v612 = vadd.f32 %v610, %v611
  %v613 = vrot.slane %v612, 1
  %v614 = vadd.f32 %v612, %v613
  %s615 = vtos %v614
  %v616 = vstv %s615
  %v617 = vrcp.pop %v616
  %s618 = vtos %v617
  %v619 = vstv %s618
  %v620 = vmul.f32 %v472, %v619
  %v621 = vmul.f32 %v477, %v619
  %622 = vst [vmem:[%s5 + $0x20] sm:$0xff] %v620
  %623 = vst [vmem:[%s5 + $0x28] sm:$0xff] %v621
  %v624 = vmul.f32 %v244, %v244
  %v625 = vmul.f32 %v247, %v247
  %v626 = vsel %vm250, %v624, 0.0
  %v627 = vsel %vm250, %v625, 0.0
  %v628 = vadd.f32 %v626, %v627
  %v629 = vrot.slane %v628, 4
  %v630 = vadd.f32 %v628, %v629
  %v631 = vrot.slane %v630, 2
  %v632 = vadd.f32 %v630, %v631
  %v633 = vrot.slane %v632, 1
  %v634 = vadd.f32 %v632, %v633
  %v635 = vmul.f32 %v134, %v134
  %v636 = vsel %vm275, %v635, 0.0
  %637 = vadd.xlane.f32.xlu0 %v636
  %v638 = vpop.xlane.xlu0 %637
  %v639 = vmul.f32 %v638, %v634
  %v640 = vrsqrt.pop %v639
  %v641 = vmul.f32 %v639, %v640
  %vm642 = vcmp.eq.f32.partialorder %v639, inf
  %v643 = vsel %vm642, %v639, %v641
  %vm644 = vcmp.eq.f32.partialorder %v639, 0.0
  %v645 = vand.u32 %v639, 2147483648
  %v646 = vsel %vm644, %v645, %v643
  %v647 = vmul.f32 %v646, %v496
  %v648 = vsel %vm521, %v647, 0.0
  %649 = vadd.xlane.f32.xlu0 %v648
  %v650 = vpop.xlane.xlu0 %649
  %v651 = vrot.slane %v650, 4
  %v652 = vadd.f32 %v650, %v651
  %v653 = vrot.slane %v652, 2
  %v654 = vadd.f32 %v652, %v653
  %v655 = vrot.slane %v654, 1
  %v656 = vadd.f32 %v654, %v655
  %s657 = vtos %v656
  %v658 = vstv %s657
  %v659 = vrcp.pop %v658
  %s660 = vtos %v659
  %v661 = vstv %s660
  %v662 = vmul.f32 %v483, %v661
  %v663 = vmul.f32 %v488, %v661
  %664 = vst [vmem:[%s5 + $0x30] sm:$0xff] %v662
  %665 = vst [vmem:[%s5 + $0x38] sm:$0xff] %v663
  // Predicated region
  $region22: #{spatio_temporal_correlation.1} parent=0 // pred_check
    _
  $region23: #{spatio_temporal_correlation.1} parent=0 // pred_check_branch
    %667 = sbr.rel (0) target = $region25
  $region24: #{spatio_temporal_correlation.1} parent=0 // pred_region
    _
  $region25: #{spatio_temporal_correlation.1} parent=0 // pred_fallthru
    _
  // Predicated region
  $region26: #{spatio_temporal_correlation.1} parent=0 // pred_check
    _
  $region27: #{spatio_temporal_correlation.1} parent=0 // pred_check_branch
    %669 = sbr.rel (0) target = $region29
  $region28: #{spatio_temporal_correlation.1} parent=0 // pred_region
    _
  $region29: #{spatio_temporal_correlation.1} parent=0 // pred_fallthru
    _

</llo_original>
